<compile_context>
chip_gen: v7x
topology: tpu7x:2x2x1
jax: 0.10.0
libtpu: 0.0.40
codegen_flags: <defaults>
</compile_context>

<pallas_src>
import jax
import jax.numpy as jnp
from jax.experimental import pallas as pl
from jax.experimental.pallas import tpu as pltpu


def _round_up(x: int, m: int) -> int:
    return ((x + m - 1) // m) * m


def _fold_chunks(x_ref, acc_ref, n_full: int, rem: int):
    """Fold the valid lanes of the current tile into the (TR, 128) running max.

    Only statically-sliced, in-bounds lanes are touched: n_full full 128-lane
    chunks plus an optional remainder of `rem` lanes (reduced to (TR, 1) and
    broadcast-maxed into the accumulator). No iota / where masking anywhere.
    """
    acc = acc_ref[...]
    for c in range(n_full):
        # Per-chunk load (no full-tile materialization); vld overlaps the
        # jnp.maximum chain since loads and VALU use separate bundle slots.
        acc = jnp.maximum(acc, x_ref[:, c * 128:(c + 1) * 128])
    if rem:
        lo = n_full * 128
        rem_max = jnp.max(x_ref[:, lo:lo + rem], axis=-1, keepdims=True)  # (TR, 1)
        acc = jnp.maximum(acc, rem_max)  # lane-broadcast max
    acc_ref[...] = acc


def _make_mac_kernel(num_hw: int, n_full_tile: int, n_full_last: int,
                     rem_last: int, neg_val):
    def kernel(x_ref, o_ref, acc_ref):
        k = pl.program_id(1)  # trailing HW reduction step ("arbitrary")

        @pl.when(k == 0)
        def _init():
            acc_ref[...] = jnp.full(acc_ref.shape, neg_val, acc_ref.dtype)

        if num_hw == 1:
            # Single spatial tile (THW == HW): fold exactly the HW valid lanes.
            _fold_chunks(x_ref, acc_ref, n_full_last, rem_last)
        elif n_full_last == n_full_tile and rem_last == 0:
            # HW divides THW exactly: every tile is full.
            _fold_chunks(x_ref, acc_ref, n_full_tile, 0)
        else:
            # Hot loop stays mask-free; only the last HW step takes the
            # partial-tile path (static slices of the valid lanes).
            @pl.when(k < num_hw - 1)
            def _full_tile():
                _fold_chunks(x_ref, acc_ref, n_full_tile, 0)

            @pl.when(k == num_hw - 1)
            def _partial_tile():
                _fold_chunks(x_ref, acc_ref, n_full_last, rem_last)

        @pl.when(k == num_hw - 1)
        def _finalize():
            # Single cheap 128 -> 1 lane (XLU) reduce at the end.
            o_ref[...] = jnp.max(acc_ref[...], axis=-1, keepdims=True).astype(o_ref.dtype)

    return kernel


def mac_pool(x: jax.Array) -> jax.Array:
    """MAC pooling: (B, C, H, W) -> (B, C) via max over spatial dims."""
    # TODO(synk): the PyTorch module's _assert_dims also accepts non-4D / dim!=1
    # inputs via a transpose+reshape; only the canonical NCHW path is implemented.
    assert x.ndim == 4, "expected NCHW input"
    B, C, H, W = x.shape
    HW = H * W
    R = B * C
    dtype = x.dtype
    itemsize = jnp.dtype(dtype).itemsize

    x2d = x.reshape(R, HW)  # free view: HW is contiguous in NCHW layout

    if jnp.issubdtype(dtype, jnp.floating):
        neg_val = float("-inf")
    else:
        neg_val = int(jnp.iinfo(dtype).min)

    # Dtype sublane tile: 8 for f32, 16 for bf16/f16, 32 for int8/fp8.
    sublane_tile = max(8, 32 // itemsize)

    LANE_TILE = 4096                    # max lanes per block when tiling HW
    BLOCK_BYTES = 8 * 1024 * 1024       # ~8 MiB of input per block (roofline target)
    SCRATCH_BUDGET = 40 * 1024 * 1024   # 2x input block + acc scratch stays under this

    # Spatial tile: full HW extent (contiguous DMA, no partial-lane handling)
    # whenever it fits the lane cap; otherwise a 128-aligned 4096-lane tile.
    THW = HW if HW <= LANE_TILE else LANE_TILE

    # Row tile from the byte budget, bounded by the VMEM double-buffer budget,
    # kept sublane-aligned, and capped so the "parallel" axis has >= 2 tiles
    # (keeps both v7x TensorCores busy) whenever there are enough rows.
    target_elems = BLOCK_BYTES // itemsize
    tr = max(1, target_elems // THW)
    tr_vmem = max(1, SCRATCH_BUDGET // (itemsize * (2 * THW + 128)))
    tr = min(tr, tr_vmem)
    tr = max(sublane_tile, (tr // sublane_tile) * sublane_tile)
    if R >= 2 * sublane_tile:
        tr = min(tr, _round_up((R + 1) // 2, sublane_tile))
    TR = R if tr >= R else tr

    num_r = pl.cdiv(R, TR)
    num_hw = pl.cdiv(HW, THW)

    n_full_tile = THW // 128                      # full-tile chunks (num_hw > 1 => THW % 128 == 0)
    valid_last = HW - (num_hw - 1) * THW          # valid lanes in the last HW tile
    n_full_last = valid_last // 128
    rem_last = valid_last % 128

    kernel = _make_mac_kernel(num_hw, n_full_tile, n_full_last, rem_last, neg_val)

    # Generation-aware VMEM ceiling: ~48 MiB on v7x (64 MiB physical),
    # up to 96 MiB on v5e/v6e (128 MiB physical).
    try:
        vmem_cap = int(pltpu.get_tpu_info().vmem_capacity_bytes)
    except Exception:
        vmem_cap = 64 * 1024 * 1024
    vmem_limit = min(vmem_cap * 3 // 4, 96 * 1024 * 1024)

    out2d = pl.pallas_call(
        kernel,
        out_shape=jax.ShapeDtypeStruct((R, 1), dtype),
        grid_spec=pltpu.PrefetchScalarGridSpec(
            num_scalar_prefetch=0,
            grid=(num_r, num_hw),
            in_specs=[pl.BlockSpec((TR, THW), lambda i, k: (i, k))],
            out_specs=pl.BlockSpec((TR, 1), lambda i, k: (i, 0)),
            # Running max kept in the INPUT dtype (max is exact; no f32 casts).
            scratch_shapes=[pltpu.VMEM((TR, 128), dtype)],
        ),
        compiler_params=pltpu.CompilerParams(
            dimension_semantics=("parallel", "arbitrary"),
            vmem_limit_bytes=vmem_limit,
        ),
        cost_estimate=pl.CostEstimate(
            flops=R * HW,
            transcendentals=0,
            bytes_accessed=R * HW * itemsize + R * itemsize,
        ),
    )(x2d)

    return out2d.reshape(B, C)


def mac_reference(x: jax.Array) -> jax.Array:
    # Pure-JAX reference: reduce(x, 'b c h w -> b c', 'max')
    return jnp.max(x, axis=(2, 3))


if __name__ == "__main__":
    key = jax.random.PRNGKey(0)
    # Small shape consistent with the module's NCHW expectation.
    x = jax.random.normal(key, (2, 4, 16, 16), dtype=jnp.float32)

    out = mac_pool(x)
    out = jax.block_until_ready(out)

    ref = mac_reference(x)
    assert out.shape == (2, 4), f"bad output shape {out.shape}"
    assert jnp.allclose(out, ref), "Pallas MAC result mismatch vs reference"

    print("KERNEL_OK")
</pallas_src>

<mosaic_0001>
module attributes {stable_mosaic.version = 11 : i64} {
  func.func @kernel(%arg0: i32, %arg1: i32, %arg2: memref<8x256xf32, #tpu.memory_space<vmem>>, %arg3: memref<8x1xf32, #tpu.memory_space<vmem>>, %arg4: memref<8x128xf32, #tpu.memory_space<vmem>>) attributes {dimension_semantics = [#tpu.dimension_semantics<parallel>, #tpu.dimension_semantics<arbitrary>], iteration_bounds = array<i64: 1, 1>, scalar_prefetch = 0 : i64, scratch_operands = 1 : i64, tpu.core_type = #tpu.core_type<tc>, window_params = [{transform_indices = @transform_0, window_bounds = array<i64: 8, 256>}, {transform_indices = @transform_1, window_bounds = array<i64: 8, 1>}]} {
    %c0_i32 = arith.constant 0 : i32
    %0 = arith.cmpi eq, %arg1, %c0_i32 : i32
    %1 = arith.extui %0 : i1 to i32
    %c0_i32_0 = arith.constant 0 : i32
    %2 = arith.cmpi ne, %1, %c0_i32_0 : i32
    scf.if %2 {
      %cst = arith.constant 0xFF800000 : f32
      %12 = vector.broadcast %cst : f32 to vector<8x128xf32>
      %c0_9 = arith.constant 0 : index
      %c0_10 = arith.constant 0 : index
      %13 = vector.load %arg4[%c0_9, %c0_10] : memref<8x128xf32, #tpu.memory_space<vmem>>, vector<8x128xf32>
      tpu.vector_store %arg4[%c0_9, %c0_10], %12 {strides = array<i32>} : memref<8x128xf32, #tpu.memory_space<vmem>>, vector<8x128xf32>,
    } else {
    }
    %c0 = arith.constant 0 : index
    %c0_1 = arith.constant 0 : index
    %3 = vector.load %arg4[%c0, %c0_1] : memref<8x128xf32, #tpu.memory_space<vmem>>, vector<8x128xf32>
    %c0_2 = arith.constant 0 : index
    %c0_3 = arith.constant 0 : index
    %4 = vector.load %arg2[%c0_2, %c0_3] : memref<8x256xf32, #tpu.memory_space<vmem>>, vector<8x128xf32>
    %5 = arith.maximumf %3, %4 : vector<8x128xf32>
    %c0_4 = arith.constant 0 : index
    %c128 = arith.constant 128 : index
    %6 = vector.load %arg2[%c0_4, %c128] : memref<8x256xf32, #tpu.memory_space<vmem>>, vector<8x128xf32>
    %7 = arith.maximumf %5, %6 : vector<8x128xf32>
    %c0_5 = arith.constant 0 : index
    %c0_6 = arith.constant 0 : index
    %8 = vector.load %arg4[%c0_5, %c0_6] : memref<8x128xf32, #tpu.memory_space<vmem>>, vector<8x128xf32>
    tpu.vector_store %arg4[%c0_5, %c0_6], %7 {strides = array<i32>} : memref<8x128xf32, #tpu.memory_space<vmem>>, vector<8x128xf32>,
    %c0_i32_7 = arith.constant 0 : i32
    %9 = arith.cmpi eq, %arg1, %c0_i32_7 : i32
    %10 = arith.extui %9 : i1 to i32
    %c0_i32_8 = arith.constant 0 : i32
    %11 = arith.cmpi ne, %10, %c0_i32_8 : i32
    scf.if %11 {
      %c0_9 = arith.constant 0 : index
      %c0_10 = arith.constant 0 : index
      %12 = vector.load %arg4[%c0_9, %c0_10] : memref<8x128xf32, #tpu.memory_space<vmem>>, vector<8x128xf32>
      %cst = arith.constant dense<0xFF800000> : vector<8xf32>
      %13 = vector.multi_reduction <maximumf>, %12, %cst [1] : vector<8x128xf32> to vector<8xf32>
      %14 = vector.shape_cast %13 : vector<8xf32> to vector<8x1xf32>
      %c0_11 = arith.constant 0 : index
      %c0_12 = arith.constant 0 : index
      %15 = vector.load %arg3[%c0_11, %c0_12] : memref<8x1xf32, #tpu.memory_space<vmem>>, vector<8x1xf32>
      tpu.vector_store %arg3[%c0_11, %c0_12], %14 {strides = array<i32>} : memref<8x1xf32, #tpu.memory_space<vmem>>, vector<8x1xf32>,
    } else {
    }
    return
  }
  func.func @transform_0(%arg0: i32, %arg1: i32) -> (i32, i32) {
    %c0_i32 = arith.constant 0 : i32
    return %arg0, %arg1 : i32, i32
  }
  func.func @transform_1(%arg0: i32, %arg1: i32) -> (i32, i32) {
    %c0_i32 = arith.constant 0 : i32
    %c0_i32_0 = arith.constant 0 : i32
    return %arg0, %c0_i32 : i32, i32
  }
}

</mosaic_0001>

<llo_original>
// kernel: tpu_custom_call.1
$region0: #{tpu_custom_call.1}
  #allocation0 [shape = 'u32[]', space=smem, size = 0x4, offset = 0x4, fixed_abs, tag = 'smem constant byte address 0x4 - core index']
  #allocation1 [shape = 'u32[144,128]{1,0:T(1,128)}', space=vmem, size = 0x12000, scoped, tag = 'internal scratch']
  #allocation2 [shape = 'f32[8,128]{1,0:T(8,128)}', space=vmem, size = 0x1000, scoped, tag = 'scratch operand']
  %s0 = inlined_call_operand.hbm [shape: f32[8,256], index: 0, kind: input, shape index: {}]
  %s1 = inlined_call_operand.vmem [shape: f32[8,1], index: 1, kind: output, shape index: {}]
  %s2 = sld [smem:[#allocation0]]
  $region26: #{tpu_custom_call.1} parent=0
    _
  %s4 = ssub.s32 1, %s2
  %s5 = scalar_select 0, %s4, %s2
  $region1: #{tpu_custom_call.1} parent=0
    #allocation3 [shape = 'u8[8192]{0}', space=vmem, size = 0x2000, scoped, tag = 'input window, operand 0, single buffered']
    #allocation4 [shape = 's32[1]{0}', space=sflag, size = 0x4, scoped, tag = 'scoped memory for tpu_custom_call.1']
    %6 = vsyncpa [#allocation4], 0
    // Predicated region
    $region2: #{tpu_custom_call.1} parent=1 // pred_check
      _
    $region3: #{tpu_custom_call.1} parent=1 // pred_check_branch
      %8 = sbr.rel (0) target = $region5
    $region4: #{tpu_custom_call.1} parent=1 // pred_region
      %s10 = ssub.s32 256, 256
      %11 = vsyncadd [#allocation4], %s10
      %s13 = sshll.u32 [#allocation3], 4
      %s14 = int_to_ptr.vmem [resolvable:$true] %s13
      %16 = dma.hbm_to_vmem [thread:$0]  %s0, 256, %s14, [#allocation4]
    $region5: #{tpu_custom_call.1} parent=1 // pred_fallthru
      _
    // Predicated region
    $region6: #{tpu_custom_call.1} parent=1 // pred_check
      _
    $region7: #{tpu_custom_call.1} parent=1 // pred_check_branch
      %18 = sbr.rel (0) target = $region9
    $region8: #{tpu_custom_call.1} parent=1 // pred_region
      %19 = dma.done [#allocation4], 256
    $region9: #{tpu_custom_call.1} parent=1 // pred_fallthru
      _
    %p20 = scmp.eq.s32.totalorder 0, 0
    // Predicated region
    $region10: #{tpu_custom_call.1} parent=1 // pred_check
      %p21 = pneg %p20
    $region11: #{tpu_custom_call.1} parent=1 // pred_check_branch
      %23 = sbr.rel (%p21) target = $region13
    $region12: #{tpu_custom_call.1} parent=1 // pred_region
      %24 = vst [vmem:[#allocation2] sm:$0xff] -inf
    $region13: #{tpu_custom_call.1} parent=1 // pred_fallthru
      _
    %v25 = vld [vmem:[#allocation2] sm:$0xff]
    %v26 = vld [vmem:[#allocation3] sm:$0xff]
    %v27 = vmax.f32 %v25, %v26
    %v28 = vld [vmem:[#allocation3 + $0x8] sm:$0xff]
    %v29 = vmax.f32 %v27, %v28
    %30 = vst [vmem:[#allocation2] sm:$0xff] %v29
    // Predicated region
    $region14: #{tpu_custom_call.1} parent=1 // pred_check
      %p31 = pneg %p20
    $region15: #{tpu_custom_call.1} parent=1 // pred_check_branch
      %33 = sbr.rel (%p31) target = $region17
    $region16: #{tpu_custom_call.1} parent=1 // pred_region
      %v34 = vld [vmem:[#allocation2] sm:$0xff]
      %35 = vmax.xlane.f32.xlu0 %v34
      %v36 = vpop.xlane.xlu0 %35
      %vm37 = vcmask 7168
      %38 = vst.msk [vmem:[%s1] sm:$0xff] %vm37, %v36
    $region17: #{tpu_custom_call.1} parent=1 // pred_fallthru
      _
    // Predicated region
    $region18: #{tpu_custom_call.1} parent=1 // pred_check
      _
    $region19: #{tpu_custom_call.1} parent=1 // pred_check_branch
      %40 = sbr.rel (0) target = $region21
    $region20: #{tpu_custom_call.1} parent=1 // pred_region
      _
    $region21: #{tpu_custom_call.1} parent=1 // pred_fallthru
      _
    // Predicated region
    $region22: #{tpu_custom_call.1} parent=1 // pred_check
      _
    $region23: #{tpu_custom_call.1} parent=1 // pred_check_branch
      %42 = sbr.rel (0) target = $region25
    $region24: #{tpu_custom_call.1} parent=1 // pred_region
      _
    $region25: #{tpu_custom_call.1} parent=1 // pred_fallthru
      _
    %43 = vsyncpa [#allocation4], 1

</llo_original>
